<compile_context>
chip_gen: v7x
topology: tpu7x:2x2x1
jax: 0.10.0
libtpu: 0.0.40
codegen_flags: <defaults>
</compile_context>

<pallas_src>
import functools

import jax
import jax.numpy as jnp
from jax.experimental import pallas as pl
from jax.experimental.pallas import tpu as pltpu


def _fused_conv_norm_act_kernel(*refs, nb, use_norm, eps, negative_slope):
    """Fused (patches @ W) [+ bias] -> optional InstanceNorm -> leaky_relu.

    Refs (in order):
      p_ref: (nb*M, K)  bf16 im2col patches for `nb` whole samples
      w_ref: (K, Cout)  bf16 reshaped conv weight
      b_ref: (1, Cout)  f32 conv bias          (only when use_norm=False)
      o_ref: (nb*M, Cout) f32 output
    """
    if use_norm:
        p_ref, w_ref, o_ref = refs
        b_ref = None
    else:
        p_ref, w_ref, b_ref, o_ref = refs

    nbm, _ = p_ref.shape
    cout = w_ref.shape[1]
    m = nbm // nb

    # MXU matmul: bf16 x bf16 -> f32 accumulation.
    y = jnp.dot(p_ref[...], w_ref[...], preferred_element_type=jnp.float32)

    if use_norm:
        # InstanceNorm2d (affine=False): per-sample, per-channel, over spatial
        # positions.  Bias is skipped: mean subtraction cancels it exactly.
        y = y.reshape(nb, m, cout)
        mean = jnp.mean(y, axis=1, keepdims=True)
        var = jnp.mean(jnp.square(y - mean), axis=1, keepdims=True)
        y = (y - mean) * jax.lax.rsqrt(var + eps)
        y = y.reshape(nbm, cout)
    else:
        y = y + b_ref[...]  # (1, Cout) broadcast

    # leaky_relu(0.2) as a single max (slope < 1).
    y = jnp.maximum(y, negative_slope * y)
    o_ref[...] = y.astype(o_ref.dtype)


def conv_instance_norm_lrelu(x_nchw, weight, bias, *, stride=2, use_norm=True,
                             negative_slope=0.2, eps=1e-5):
    """ConvolutionNorm.forward: conv(k=4, pad=1, stride) [+ IN] + leaky_relu."""
    k, pad = 4, 1
    n, c, h, w = x_nchw.shape
    cout = weight.shape[0]
    ho = (h + 2 * pad - k) // stride + 1
    wo = (w + 2 * pad - k) // stride + 1
    m = ho * wo
    kk = k * k * c

    # --- XLA glue: im2col in bf16 (halves HBM bytes of the expanded tensor) ---
    x = jnp.transpose(x_nchw, (0, 2, 3, 1)).astype(jnp.bfloat16)       # NHWC
    xp = jnp.pad(x, ((0, 0), (pad, pad), (pad, pad), (0, 0)))
    cols = []
    for ki in range(k):
        for kj in range(k):
            cols.append(
                xp[:, ki:ki + stride * ho:stride, kj:kj + stride * wo:stride, :])
    # (N, Ho, Wo, k*k, C) -> (N*M, K), K index = (ki*k + kj)*C + c
    patches = jnp.stack(cols, axis=3).reshape(n * m, kk)

    # PyTorch weight (Cout, Cin, kh, kw) -> (kh, kw, Cin, Cout) -> (K, Cout)
    w_mat = jnp.transpose(weight, (2, 3, 1, 0)).reshape(kk, cout).astype(jnp.bfloat16)
    b_vec = bias.reshape(1, cout).astype(jnp.float32)

    # --- batch-chunking: fold whole samples into the matmul M dimension ------
    # Target >= 256 rows per matmul (fills v6e/v7x MXU) but keep >= 2 grid
    # steps when N >= 2 so both v7x TensorCores get work.
    nb = max(1, min(n, 256 // max(m, 1)))
    while n % nb:
        nb -= 1
    if n // nb == 1 and n >= 2:
        nb = max(1, n // 2)
        while n % nb:
            nb -= 1
    if n // nb > 1 and (nb * m) % 16 != 0:
        nb = n  # fall back to a single full block (always a legal block shape)
    grid_n = n // nb
    rows_blk = nb * m

    kern = functools.partial(_fused_conv_norm_act_kernel, nb=nb,
                             use_norm=use_norm, eps=eps,
                             negative_slope=negative_slope)

    in_specs = [
        pl.BlockSpec((rows_blk, kk), lambda b: (b, 0)),   # patch chunk
        pl.BlockSpec((kk, cout), lambda b: (0, 0)),       # weight (resident)
    ]
    args = [patches, w_mat]
    if not use_norm:
        in_specs.append(pl.BlockSpec((1, cout), lambda b: (0, 0)))
        args.append(b_vec)

    out = pl.pallas_call(
        kern,
        out_shape=jax.ShapeDtypeStruct((n * m, cout), jnp.float32),
        grid=(grid_n,),
        in_specs=in_specs,
        out_specs=pl.BlockSpec((rows_blk, cout), lambda b: (b, 0)),
        compiler_params=pltpu.CompilerParams(dimension_semantics=("parallel",)),
    )(*args)

    out = out.reshape(n, ho, wo, cout)
    return jnp.transpose(out, (0, 3, 1, 2))  # NHWC -> NCHW


@functools.partial(jax.jit, static_argnames=("stride", "use_norm"))
def convolution_norm_forward(weight, bias, x_nchw, stride=2, use_norm=True):
    return conv_instance_norm_lrelu(x_nchw, weight, bias,
                                    stride=stride, use_norm=use_norm)


def init_params(key, in_channels, out_channels):
    """Deterministic synthetic Conv2d(k=4) params."""
    kw, kb = jax.random.split(key)
    w = 0.02 * jax.random.normal(kw, (out_channels, in_channels, 4, 4), jnp.float32)
    bound = 1.0 / jnp.sqrt(jnp.float32(in_channels * 4 * 4))
    b = jax.random.uniform(kb, (out_channels,), jnp.float32, -bound, bound)
    return w, b


if __name__ == "__main__":
    key = jax.random.PRNGKey(0)
    pkey, xkey = jax.random.split(key)

    # Small shapes consistent with the module: batch=2, in_channels=4,
    # out_channels=64, 16x16 spatial, stride=2 -> output (2, 64, 8, 8).
    in_ch, out_ch = 4, 64
    weight, bias = init_params(pkey, in_ch, out_ch)
    x = jax.random.normal(xkey, (2, in_ch, 16, 16), jnp.float32)

    # Default path: conv + InstanceNorm + leaky_relu.
    y = convolution_norm_forward(weight, bias, x, stride=2, use_norm=True)
    y = jax.block_until_ready(y)
    assert y.shape == (2, out_ch, 8, 8), y.shape
    assert bool(jnp.all(jnp.isfinite(y)))

    # use_norm=False path: conv + bias + leaky_relu.
    y2 = convolution_norm_forward(weight, bias, x, stride=2, use_norm=False)
    y2 = jax.block_until_ready(y2)
    assert y2.shape == (2, out_ch, 8, 8), y2.shape
    assert bool(jnp.all(jnp.isfinite(y2)))

    print("KERNEL_OK")
</pallas_src>

<mosaic_0001>
module attributes {stable_mosaic.version = 11 : i64} {
  func.func @_fused_conv_norm_act_kernel(%arg0: i32, %arg1: memref<64x64xbf16, #tpu.memory_space<vmem>>, %arg2: memref<64x64xbf16, #tpu.memory_space<vmem>>, %arg3: memref<64x64xf32, #tpu.memory_space<vmem>>) attributes {dimension_semantics = [#tpu.dimension_semantics<parallel>], iteration_bounds = array<i64: 2>, scalar_prefetch = 0 : i64, scratch_operands = 0 : i64, tpu.core_type = #tpu.core_type<tc>, window_params = [{transform_indices = @transform_0, window_bounds = array<i64: 64, 64>}, {pipeline_mode = #tpu.pipeline_mode<synchronous>, transform_indices = @transform_1, window_bounds = array<i64: 64, 64>}, {transform_indices = @transform_2, window_bounds = array<i64: 64, 64>}]} {
    %c0 = arith.constant 0 : index
    %c0_0 = arith.constant 0 : index
    %0 = vector.load %arg1[%c0, %c0_0] : memref<64x64xbf16, #tpu.memory_space<vmem>>, vector<64x64xbf16>
    %c0_1 = arith.constant 0 : index
    %c0_2 = arith.constant 0 : index
    %1 = vector.load %arg2[%c0_1, %c0_2] : memref<64x64xbf16, #tpu.memory_space<vmem>>, vector<64x64xbf16>
    %cst = arith.constant dense<0.000000e+00> : vector<64x64xf32>
    %2 = tpu.matmul %0, %1, %cst {dimension_numbers = #tpu.dot_dimension_numbers<[1], [0], [0], [1], [0, 0, 1, 1], [], []>} : vector<64x64xbf16>, vector<64x64xbf16>, vector<64x64xf32> -> vector<64x64xf32>
    %3 = vector.shape_cast %2 : vector<64x64xf32> to vector<1x64x64xf32>
    %cst_3 = arith.constant dense<0.000000e+00> : vector<1x64xf32>
    %4 = vector.multi_reduction <add>, %3, %cst_3 [1] : vector<1x64x64xf32> to vector<1x64xf32>
    %5 = vector.shape_cast %4 : vector<1x64xf32> to vector<1x1x64xf32>
    %cst_4 = arith.constant 6.400000e+01 : f32
    %6 = vector.broadcast %cst_4 : f32 to vector<1x1x64xf32>
    %7 = arith.divf %5, %6 : vector<1x1x64xf32>
    %8 = vector.broadcast %7 : vector<1x1x64xf32> to vector<1x64x64xf32>
    %9 = arith.subf %3, %8 : vector<1x64x64xf32>
    %10 = arith.mulf %9, %9 : vector<1x64x64xf32>
    %cst_5 = arith.constant dense<0.000000e+00> : vector<1x64xf32>
    %11 = vector.multi_reduction <add>, %10, %cst_5 [1] : vector<1x64x64xf32> to vector<1x64xf32>
    %12 = vector.shape_cast %11 : vector<1x64xf32> to vector<1x1x64xf32>
    %cst_6 = arith.constant 6.400000e+01 : f32
    %13 = vector.broadcast %cst_6 : f32 to vector<1x1x64xf32>
    %14 = arith.divf %12, %13 : vector<1x1x64xf32>
    %15 = vector.broadcast %7 : vector<1x1x64xf32> to vector<1x64x64xf32>
    %16 = arith.subf %3, %15 : vector<1x64x64xf32>
    %cst_7 = arith.constant 9.99999974E-6 : f32
    %17 = vector.broadcast %cst_7 : f32 to vector<1x1x64xf32>
    %18 = arith.addf %14, %17 : vector<1x1x64xf32>
    %19 = math.rsqrt %18 : vector<1x1x64xf32>
    %20 = vector.broadcast %19 : vector<1x1x64xf32> to vector<1x64x64xf32>
    %21 = arith.mulf %16, %20 : vector<1x64x64xf32>
    %22 = vector.shape_cast %21 : vector<1x64x64xf32> to vector<64x64xf32>
    %cst_8 = arith.constant 2.000000e-01 : f32
    %23 = vector.broadcast %cst_8 : f32 to vector<64x64xf32>
    %24 = arith.mulf %23, %22 : vector<64x64xf32>
    %25 = arith.maximumf %22, %24 : vector<64x64xf32>
    %c0_9 = arith.constant 0 : index
    %c0_10 = arith.constant 0 : index
    %26 = vector.load %arg3[%c0_9, %c0_10] : memref<64x64xf32, #tpu.memory_space<vmem>>, vector<64x64xf32>
    tpu.vector_store %arg3[%c0_9, %c0_10], %25 {strides = array<i32>} : memref<64x64xf32, #tpu.memory_space<vmem>>, vector<64x64xf32>,
    return
  }
  func.func @transform_0(%arg0: i32) -> (i32, i32) {
    %c0_i32 = arith.constant 0 : i32
    %c0_i32_0 = arith.constant 0 : i32
    return %arg0, %c0_i32 : i32, i32
  }
  func.func @transform_1(%arg0: i32) -> (i32, i32) {
    %c0_i32 = arith.constant 0 : i32
    %c0_i32_0 = arith.constant 0 : i32
    %c0_i32_1 = arith.constant 0 : i32
    return %c0_i32, %c0_i32_0 : i32, i32
  }
  func.func @transform_2(%arg0: i32) -> (i32, i32) {
    %c0_i32 = arith.constant 0 : i32
    %c0_i32_0 = arith.constant 0 : i32
    return %arg0, %c0_i32 : i32, i32
  }
}

</mosaic_0001>

<llo_original>
// kernel: convolution_norm_forward.1
$region0: #{convolution_norm_forward.1}
  #allocation0 [shape = 'u32[]', space=smem, size = 0x4, offset = 0x4, fixed_abs, tag = 'smem constant byte address 0x4 - core index']
  #allocation1 [shape = 'u32[144,128]{1,0:T(1,128)}', space=vmem, size = 0x12000, scoped, tag = 'internal scratch']
  %s0 = inlined_call_operand.vmem [shape: bf16[128,64], index: 0, kind: input, shape index: {}]
  %s1 = inlined_call_operand.vmem [shape: bf16[64,64], index: 1, kind: input, shape index: {}]
  %s2 = inlined_call_operand.hbm [shape: f32[128,64], index: 2, kind: output, shape index: {}]
  %s3 = sld [smem:[#allocation0]]
  $region41: #{convolution_norm_forward.1} parent=0
    _
  %s5 = ssub.s32 1, %s3
  %s6 = scalar_select 0, %s5, %s3
  $region1: #{convolution_norm_forward.1} parent=0
    #allocation2 [shape = 'u8[65536]{0}', space=vmem, size = 0x10000, scoped, tag = 'output window, operand 0']
    #allocation3 [shape = 's32[2]{0}', space=sflag, size = 0x8, scoped, tag = 'scoped memory for convolution_norm_forward.1']
    %7 = vsyncpa [#allocation3], 0
    %s8 = scalar_lea.sflag [#allocation3], 1
    %9 = vsyncpa %s8, 0
    loop: start=0, step=1, limit=4
    $region2: #{convolution_norm_forward.1} parent=1 // loop_pre_header
      _
    $region3: #{convolution_norm_forward.1} parent=1 // loop_header
      %s11 = sphi 0, %s15
      %p12 = scmp.ge.s32.totalorder %s11, 4
      %s21 = sphi 0, %s23
      %s24 = sphi 0, %s21
      %s25 = sphi 0, %s24
      %s41 = sphi 0, %s25
      %s45 = sphi 0, %s45
      %s47 = sphi 0, %s45
      %s48 = sphi 0, %s47
      %s62 = sphi 0, %s48
      %s68 = sphi 0, %s70
      %s71 = sphi 0, %s68
      %s72 = sphi 0, %s71
      %s88 = sphi 0, %s72
    $region4: #{convolution_norm_forward.1} parent=1 // loop_header_branch
      %14 = sbr.rel (%p12) target = $region8
    $region5: #{convolution_norm_forward.1} parent=1 // loop_body
      %s16 = ssub.s32 %s11, 1
      %s17 = ssub.s32 %s11, 2
      %s18 = sadd.s32 %s11, 1
      %s19 = ssub.s32 %s11, %s18
      %p20 = scmp.eq.s32.totalorder %s19, 0
      %s22 = sadd.s32 %s21, 1
      %s23 = scalar_select %p20, %s21, %s22
      %p26 = pneg %p20
      %p27 = scmp.eq.s32.totalorder %s11, 1
      %p28 = por %p26, %p27
      %p29 = scmp.ne.s32.totalorder %s21, %s24
      %p30 = scmp.eq.s32.totalorder %s11, 0
      %p31 = por %p29, %p30
      %p32 = scmp.ne.s32.totalorder %s21, %s24
      %p33 = scmp.eq.s32.totalorder %s16, 1
      %p34 = por %p32, %p33
      %p35 = scmp.ne.s32.totalorder %s24, %s25
      %p36 = scmp.eq.s32.totalorder %s16, 0
      %p37 = por %p35, %p36
      %p38 = scmp.ne.s32.totalorder %s24, %s25
      %p39 = scmp.eq.s32.totalorder %s17, 1
      %p40 = por %p38, %p39
      %p42 = scmp.ne.s32.totalorder %s25, %s41
      %p43 = scmp.eq.s32.totalorder %s17, 0
      %p44 = por %p42, %p43
      %s46 = sadd.s32 %s45, 1
      %p49 = scmp.eq.s32.totalorder %s11, 1
      %p50 = scmp.ne.s32.totalorder %s45, %s47
      %p51 = scmp.eq.s32.totalorder %s11, 0
      %p52 = por %p50, %p51
      %p53 = scmp.ne.s32.totalorder %s45, %s47
      %p54 = scmp.eq.s32.totalorder %s16, 1
      %p55 = por %p53, %p54
      %p56 = scmp.ne.s32.totalorder %s47, %s48
      %p57 = scmp.eq.s32.totalorder %s16, 0
      %p58 = por %p56, %p57
      %p59 = scmp.ne.s32.totalorder %s47, %s48
      %p60 = scmp.eq.s32.totalorder %s17, 1
      %p61 = por %p59, %p60
      %p63 = scmp.ne.s32.totalorder %s48, %s62
      %p64 = scmp.eq.s32.totalorder %s17, 0
      %p65 = por %p63, %p64
      %s66 = ssub.s32 %s11, %s18
      %p67 = scmp.eq.s32.totalorder %s66, 0
      %s69 = sadd.s32 %s68, 1
      %s70 = scalar_select %p67, %s68, %s69
      %p73 = pneg %p67
      %p74 = scmp.eq.s32.totalorder %s11, 1
      %p75 = por %p73, %p74
      %p76 = scmp.ne.s32.totalorder %s68, %s71
      %p77 = scmp.eq.s32.totalorder %s11, 0
      %p78 = por %p76, %p77
      %p79 = scmp.ne.s32.totalorder %s68, %s71
      %p80 = scmp.eq.s32.totalorder %s16, 1
      %p81 = por %p79, %p80
      %p82 = scmp.ne.s32.totalorder %s71, %s72
      %p83 = scmp.eq.s32.totalorder %s16, 0
      %p84 = por %p82, %p83
      %p85 = scmp.ne.s32.totalorder %s71, %s72
      %p86 = scmp.eq.s32.totalorder %s17, 1
      %p87 = por %p85, %p86
      %p89 = scmp.ne.s32.totalorder %s72, %s88
      %p90 = scmp.eq.s32.totalorder %s17, 0
      %p91 = por %p89, %p90
      %p92 = scmp.le.s32.totalorder 1, %s11
      %p93 = scmp.lt.s32.totalorder %s11, 3
      %p94 = pnand %p92, %p93
      %p95 = pneg %p94
      // Predicated region
      $region9: #{convolution_norm_forward.1} parent=5 // pred_check
        _
      $region10: #{convolution_norm_forward.1} parent=5 // pred_check_branch
        %97 = sbr.rel (%p94) target = $region12
      $region11: #{convolution_norm_forward.1} parent=5 // pred_region
        %s98 = ssub.s32 %s11, 1
        // Predicated region
        $region13: #{convolution_norm_forward.1} parent=11 // pred_check
          %p99 = pneg %p58
        $region14: #{convolution_norm_forward.1} parent=11 // pred_check_branch
          %101 = sbr.rel (%p99) target = $region16
        $region15: #{convolution_norm_forward.1} parent=11 // pred_region
          _
        $region16: #{convolution_norm_forward.1} parent=11 // pred_fallthru
          _
      $region12: #{convolution_norm_forward.1} parent=5 // pred_fallthru
        _
      %p102 = scmp.lt.s32.totalorder %s11, 2
      // Predicated region
      $region17: #{convolution_norm_forward.1} parent=5 // pred_check
        %p103 = pneg %p102
      $region18: #{convolution_norm_forward.1} parent=5 // pred_check_branch
        %105 = sbr.rel (%p103) target = $region20
      $region19: #{convolution_norm_forward.1} parent=5 // pred_region
        // Predicated region
        $region21: #{convolution_norm_forward.1} parent=19 // pred_check
          %p106 = pneg %p31
        $region22: #{convolution_norm_forward.1} parent=19 // pred_check_branch
          %108 = sbr.rel (%p106) target = $region24
        $region23: #{convolution_norm_forward.1} parent=19 // pred_region
          %s109 = smul.u32 8, %s11
          %p110 = scmp.lt.s32.totalorder %s109, 15
          %s111 = scalar_select %p110, %s109, 15
          %s112 = smul.addr %s111, 4
          %s113 = scalar_lea.vmem %s0, %s112
          %s114 = smul.u32 8, %s11
        $region24: #{convolution_norm_forward.1} parent=19 // pred_fallthru
          _
      $region20: #{convolution_norm_forward.1} parent=5 // pred_fallthru
        _
      %p115 = scmp.le.s32.totalorder 1, %s11
      %p116 = scmp.lt.s32.totalorder %s11, 3
      %p117 = pnand %p115, %p116
      %p118 = pneg %p117
      // Predicated region
      $region25: #{convolution_norm_forward.1} parent=5 // pred_check
        _
      $region26: #{convolution_norm_forward.1} parent=5 // pred_check_branch
        %120 = sbr.rel (%p117) target = $region28
      $region27: #{convolution_norm_forward.1} parent=5 // pred_region
        %s121 = ssub.s32 %s11, 1
        %s122 = smul.u32 8, %s16
        %p123 = scmp.lt.s32.totalorder %s122, 15
        %s124 = scalar_select %p123, %s122, 15
        %s125 = smul.addr %s124, 4
        %s126 = scalar_lea.vmem %s0, %s125
        %p127 = pneg %p37
        %p128 = pneg %p34
        %p129 = pneg %p58
        %p130 = pneg %p55
        %p131 = pneg %p84
        %p132 = pneg %p81
        %s133 = sand.u32 %s71, 1
        %s134 = scalar_lea.sflag [#allocation3], %s133
        %s135 = sand.u32 %s71, 1
        %s136 = smul.addr %s135, 64
        %s137 = scalar_lea.vmem [#allocation2], %s136
        %s138 = smul.u32 8, %s16
        %p139 = scmp.lt.s32.totalorder %s138, 15
        %s140 = scalar_select %p139, %s138, 15
        %s141 = smul.addr %s140, 4
        %s142 = scalar_lea.vmem %s0, %s141
        %s143 = smul.u32 8, %s16
        %s144 = smul.u32 8, %s16
        %v146 = vld [vmem:[%s142] sm:$0xf]
        %v147 = vld [vmem:[%s142 + $0x4] sm:$0xf]
        %v148 = vld [vmem:[%s142 + $0x8] sm:$0xf]
        %v149 = vld [vmem:[%s142 + $0xc] sm:$0xf]
        %v150 = vld [vmem:[%s142 + $0x10] sm:$0xf]
        %v151 = vld [vmem:[%s142 + $0x14] sm:$0xf]
        %v152 = vld [vmem:[%s142 + $0x18] sm:$0xf]
        %v153 = vld [vmem:[%s142 + $0x1c] sm:$0xf]
        %v154 = vld [vmem:[%s1] sm:$0xf]
        %v155 = vld [vmem:[%s1 + $0x4] sm:$0xf]
        %v156 = vld [vmem:[%s1 + $0x8] sm:$0xf]
        %v157 = vld [vmem:[%s1 + $0xc] sm:$0xf]
        %v158 = vld [vmem:[%s1 + $0x10] sm:$0xf]
        %v159 = vld [vmem:[%s1 + $0x14] sm:$0xf]
        %v160 = vld [vmem:[%s1 + $0x18] sm:$0xf]
        %v161 = vld [vmem:[%s1 + $0x1c] sm:$0xf]
        %v170 = vunpack.c.l.b16 %v146
        %v171 = vunpack.c.l.b16 %v147
        %v172 = vunpack.c.l.b16 %v148
        %v173 = vunpack.c.l.b16 %v149
        %v174 = vunpack.c.l.b16 %v150
        %v175 = vunpack.c.l.b16 %v151
        %v176 = vunpack.c.l.b16 %v152
        %v177 = vunpack.c.l.b16 %v153
        %v178 = vpack.c.b16 %v171, %v170
        %v179 = vpack.c.b16 %v173, %v172
        %v180 = vpack.c.b16 %v175, %v174
        %v181 = vpack.c.b16 %v177, %v176
        %v190 = vunpack.c.l.b16 %v154
        %v191 = vunpack.c.l.b16 %v155
        %v192 = vunpack.c.l.b16 %v156
        %v193 = vunpack.c.l.b16 %v157
        %v194 = vunpack.c.l.b16 %v158
        %v195 = vunpack.c.l.b16 %v159
        %v196 = vunpack.c.l.b16 %v160
        %v197 = vunpack.c.l.b16 %v161
        %v198 = vpack.c.b16 %v191, %v190
        %v199 = vpack.c.b16 %v193, %v192
        %v200 = vpack.c.b16 %v195, %v194
        %v201 = vpack.c.b16 %v197, %v196
        %vm206 = vcmask 523264
        %v208 = vsel %vm206, %v178, 0
        %v211 = vsel %vm206, %v179, 0
        %v214 = vsel %vm206, %v180, 0
        %v217 = vsel %vm206, %v181, 0
        %219 = vmatprep.subr.bf16.mxu0 0
        %220 = vmatpush1.bf16.msra.mxu0 %v198
        %221 = vmatprep.subr.bf16.mxu0 0
        %222 = vmatpush1.bf16.msra.mxu0 %v199
        %223 = vmatprep.subr.bf16.mxu0 0
        %224 = vmatpush1.bf16.msra.mxu0 %v200
        %225 = vmatprep.subr.bf16.mxu0 0
        %226 = vmatpush1.bf16.msra.mxu0 %v201
        %227 = vmatprep.subr.bf16.mxu0 0
        %228 = vmatpush1.bf16.msra.mxu0 0
        %229 = vmatprep.subr.bf16.mxu0 0
        %230 = vmatpush1.bf16.msra.mxu0 0
        %231 = vmatprep.subr.bf16.mxu0 0
        %232 = vmatpush1.bf16.msra.mxu0 0
        %233 = vmatprep.subr.bf16.mxu0 0
        %234 = vmatpush1.bf16.msra.mxu0 0
        %235 = vmatprep.subr.bf16.mxu0 0
        %236 = vmatpush1.bf16.msra.mxu0 0
        %237 = vmatprep.subr.bf16.mxu0 0
        %238 = vmatpush1.bf16.msra.mxu0 0
        %239 = vmatprep.subr.bf16.mxu0 0
        %240 = vmatpush1.bf16.msra.mxu0 0
        %241 = vmatprep.subr.bf16.mxu0 0
        %242 = vmatpush1.bf16.msra.mxu0 0
        %243 = vmatprep.subr.bf16.mxu0 0
        %244 = vmatpush1.bf16.msra.mxu0 0
        %245 = vmatprep.subr.bf16.mxu0 0
        %246 = vmatpush1.bf16.msra.mxu0 0
        %247 = vmatprep.subr.bf16.mxu0 0
        %248 = vmatpush1.bf16.msra.mxu0 0
        %249 = vmatprep.subr.bf16.mxu0 0
        %250 = vmatpush1.bf16.msra.mxu0 0
        %251 = vmatprep.mubr.bf16.mxu0 0
        %252 = vmatmul.mubr.bf16.gmra.mrb[0].mxu0 %v208
        %v253 = vpop.f32.mrb[0].mxu0
        %v254 = vadd.f32 0.0, %v253
        %v255 = vpop.f32.mrb[0].mxu0
        %v256 = vpop.f32.mrb[0].mxu0
        %v257 = vadd.f32 0.0, %v256
        %v258 = vpop.f32.mrb[0].mxu0
        %259 = vmatprep.mubr.bf16.mxu0 0
        %260 = vmatmul.mubr.bf16.gmra.mrb[0].mxu0 %v211
        %v261 = vpop.f32.mrb[0].mxu0
        %v262 = vadd.f32 0.0, %v261
        %v263 = vpop.f32.mrb[0].mxu0
        %v264 = vpop.f32.mrb[0].mxu0
        %v265 = vadd.f32 0.0, %v264
        %v266 = vpop.f32.mrb[0].mxu0
        %267 = vmatprep.mubr.bf16.mxu0 0
        %268 = vmatmul.mubr.bf16.gmra.mrb[0].mxu0 %v214
        %v269 = vpop.f32.mrb[0].mxu0
        %v270 = vadd.f32 0.0, %v269
        %v271 = vpop.f32.mrb[0].mxu0
        %v272 = vpop.f32.mrb[0].mxu0
        %v273 = vadd.f32 0.0, %v272
        %v274 = vpop.f32.mrb[0].mxu0
        %275 = vmatprep.mubr.bf16.mxu0 0
        %276 = vmatmul.mubr.bf16.gmra.mrb[0].mxu0 %v217
        %v277 = vpop.f32.mrb[0].mxu0
        %v278 = vadd.f32 0.0, %v277
        %v279 = vpop.f32.mrb[0].mxu0
        %v280 = vpop.f32.mrb[0].mxu0
        %v281 = vadd.f32 0.0, %v280
        %v282 = vpop.f32.mrb[0].mxu0
        %283 = vdwg.mxu0
        %v284 = vsel %vm206, %v254, 0.0
        %v285 = vsel %vm206, %v257, 0.0
        %v286 = vadd.f32 %v284, %v285
        %v287 = vsel %vm206, %v262, 0.0
        %v288 = vadd.f32 %v286, %v287
        %v289 = vsel %vm206, %v265, 0.0
        %v290 = vadd.f32 %v288, %v289
        %v291 = vsel %vm206, %v270, 0.0
        %v292 = vadd.f32 %v290, %v291
        %v293 = vsel %vm206, %v273, 0.0
        %v294 = vadd.f32 %v292, %v293
        %v295 = vsel %vm206, %v278, 0.0
        %v296 = vadd.f32 %v294, %v295
        %v297 = vsel %vm206, %v281, 0.0
        %v298 = vadd.f32 %v296, %v297
        %v299 = vrot.slane %v298, 4
        %v300 = vadd.f32 %v298, %v299
        %v301 = vrot.slane %v300, 2
        %v302 = vadd.f32 %v300, %v301
        %v303 = vrot.slane %v302, 1
        %v304 = vadd.f32 %v302, %v303
        %v305 = vrcp.pop 64.0
        %v306 = vmul.f32 %v304, %v305
        %v307 = vsub.f32 %v254, %v306
        %v308 = vsub.f32 %v257, %v306
        %v309 = vsub.f32 %v262, %v306
        %v310 = vsub.f32 %v265, %v306
        %v311 = vsub.f32 %v270, %v306
        %v312 = vsub.f32 %v273, %v306
        %v313 = vsub.f32 %v278, %v306
        %v314 = vsub.f32 %v281, %v306
        %v315 = vmul.f32 %v307, %v307
        %v316 = vmul.f32 %v308, %v308
        %v317 = vmul.f32 %v309, %v309
        %v318 = vmul.f32 %v310, %v310
        %v319 = vmul.f32 %v311, %v311
        %v320 = vmul.f32 %v312, %v312
        %v321 = vmul.f32 %v313, %v313
        %v322 = vmul.f32 %v314, %v314
        %v323 = vsel %vm206, %v315, 0.0
        %v324 = vsel %vm206, %v316, 0.0
        %v325 = vadd.f32 %v323, %v324
        %v326 = vsel %vm206, %v317, 0.0
        %v327 = vadd.f32 %v325, %v326
        %v328 = vsel %vm206, %v318, 0.0
        %v329 = vadd.f32 %v327, %v328
        %v330 = vsel %vm206, %v319, 0.0
        %v331 = vadd.f32 %v329, %v330
        %v332 = vsel %vm206, %v320, 0.0
        %v333 = vadd.f32 %v331, %v332
        %v334 = vsel %vm206, %v321, 0.0
        %v335 = vadd.f32 %v333, %v334
        %v336 = vsel %vm206, %v322, 0.0
        %v337 = vadd.f32 %v335, %v336
        %v338 = vrot.slane %v337, 4
        %v339 = vadd.f32 %v337, %v338
        %v340 = vrot.slane %v339, 2
        %v341 = vadd.f32 %v339, %v340
        %v342 = vrot.slane %v341, 1
        %v343 = vadd.f32 %v341, %v342
        %v344 = vmul.f32 %v343, %v305
        %v345 = vadd.f32 %v344, 1e-05
        %v346 = vrsqrt.pop %v345
        %v347 = vmul.f32 %v307, %v346
        %v348 = vmul.f32 %v308, %v346
        %v349 = vmul.f32 %v309, %v346
        %v350 = vmul.f32 %v310, %v346
        %v351 = vmul.f32 %v311, %v346
        %v352 = vmul.f32 %v312, %v346
        %v353 = vmul.f32 %v313, %v346
        %v354 = vmul.f32 %v314, %v346
        %v355 = vmul.f32 %v347, 0.2
        %v356 = vmul.f32 %v348, 0.2
        %v357 = vmul.f32 %v349, 0.2
        %v358 = vmul.f32 %v350, 0.2
        %v359 = vmul.f32 %v351, 0.2
        %v360 = vmul.f32 %v352, 0.2
        %v361 = vmul.f32 %v353, 0.2
        %v362 = vmul.f32 %v354, 0.2
        %v363 = vmax.f32 %v347, %v355
        %v364 = vmax.f32 %v348, %v356
        %v365 = vmax.f32 %v349, %v357
        %v366 = vmax.f32 %v350, %v358
        %v367 = vmax.f32 %v351, %v359
        %v368 = vmax.f32 %v352, %v360
        %v369 = vmax.f32 %v353, %v361
        %v370 = vmax.f32 %v354, %v362
        %371 = vst.msk [vmem:[%s137] sm:$0xff] %vm206, %v363
        %372 = vst.msk [vmem:[%s137 + $0x8] sm:$0xff] %vm206, %v364
        %373 = vst.msk [vmem:[%s137 + $0x10] sm:$0xff] %vm206, %v365
        %374 = vst.msk [vmem:[%s137 + $0x18] sm:$0xff] %vm206, %v366
        %375 = vst.msk [vmem:[%s137 + $0x20] sm:$0xff] %vm206, %v367
        %376 = vst.msk [vmem:[%s137 + $0x28] sm:$0xff] %vm206, %v368
        %377 = vst.msk [vmem:[%s137 + $0x30] sm:$0xff] %vm206, %v369
        %378 = vst.msk [vmem:[%s137 + $0x38] sm:$0xff] %vm206, %v370
        %s379 = sand.u32 %s71, 1
        %s380 = scalar_lea.sflag [#allocation3], %s379
        %s381 = sand.u32 %s71, 1
        %s382 = smul.addr %s381, 64
        %s383 = scalar_lea.vmem [#allocation2], %s382
        // Predicated region
        $region29: #{convolution_norm_forward.1} parent=27 // pred_check
          %p384 = pneg %p81
        $region30: #{convolution_norm_forward.1} parent=27 // pred_check_branch
          %386 = sbr.rel (%p384) target = $region32
        $region31: #{convolution_norm_forward.1} parent=27 // pred_region
          %s387 = smul.u32 8, %s16
          %s389 = ssub.s32 1024, 1024
          %390 = vsyncadd %s380, %s389
          %s391 = smul.addr %s387, 128
          %s392 = scalar_lea.hbm %s2, %s391
          %s393 = sshll.u32 %s383, 4
          %s394 = int_to_ptr.vmem [resolvable:$true] %s393
          %399 = dma.vmem_to_hbm [thread:$0]  %s394, 1024, %s392, %s380, 128, 128, 8
        $region32: #{convolution_norm_forward.1} parent=27 // pred_fallthru
          _
      $region28: #{convolution_norm_forward.1} parent=5 // pred_fallthru
        _
      %p400 = scmp.le.s32.totalorder 2, %s11
      // Predicated region
      $region33: #{convolution_norm_forward.1} parent=5 // pred_check
        %p401 = pneg %p400
      $region34: #{convolution_norm_forward.1} parent=5 // pred_check_branch
        %403 = sbr.rel (%p401) target = $region36
      $region35: #{convolution_norm_forward.1} parent=5 // pred_region
        %s404 = ssub.s32 %s11, 2
        // Predicated region
        $region37: #{convolution_norm_forward.1} parent=35 // pred_check
          %p405 = pneg %p87
        $region38: #{convolution_norm_forward.1} parent=35 // pred_check_branch
          %407 = sbr.rel (%p405) target = $region40
        $region39: #{convolution_norm_forward.1} parent=35 // pred_region
          %s408 = sand.u32 %s72, 1
          %s409 = scalar_lea.sflag [#allocation3], %s408
          %s410 = sand.u32 %s72, 1
          %s411 = smul.addr %s410, 64
          %s412 = scalar_lea.vmem [#allocation2], %s411
          %413 = dma.done %s409, 1024
        $region40: #{convolution_norm_forward.1} parent=35 // pred_fallthru
          _
      $region36: #{convolution_norm_forward.1} parent=5 // pred_fallthru
        _
    $region6: #{convolution_norm_forward.1} parent=1 // loop_footer
      %s15 = sadd.s32 1, %s11
    $region7: #{convolution_norm_forward.1} parent=1 // loop_footer_branch
      %10 = sbr.rel target = $region3
    $region8: #{convolution_norm_forward.1} parent=1 // loop_exit
      _
    %414 = vsyncpa [#allocation3], 1
    %s415 = scalar_lea.sflag [#allocation3], 1
    %416 = vsyncpa %s415, 1

</llo_original>
